<compile_context>
chip_gen: v7x
topology: tpu7x:2x2x1
jax: 0.10.0
libtpu: 0.0.40
codegen_flags: <defaults>
</compile_context>

<pallas_src>
import jax
import jax.numpy as jnp
from jax.experimental import pallas as pl
from jax.experimental.pallas import tpu as pltpu


def _round_up(x: int, m: int) -> int:
    return (x + m - 1) // m * m


def _linear_bias_relu_kernel(x_ref, w_ref, b_ref, o_ref, xb_ref):
    # x_ref : (tm, K) f32   -- resident across the inner (column) grid axis
    # w_ref : (K, tn) bf16  -- streamed per column step
    # b_ref : (1, tn) f32
    # o_ref : (tm, tn) out dtype
    # xb_ref: (tm, K) bf16 VMEM scratch -- activation tile cast once per ROW tile
    @pl.when(pl.program_id(1) == 0)
    def _():
        xb_ref[...] = x_ref[...].astype(jnp.bfloat16)

    y = jnp.dot(xb_ref[...], w_ref[...], preferred_element_type=jnp.float32)
    y = y + b_ref[...]                              # f32 epilogue (bias broadcast)
    o_ref[...] = jnp.maximum(y, 0.0).astype(o_ref.dtype)


def fc7_linear_relu(x2d, w, b2, *, out_cols=None, tm=None, tn=None, out_dtype=None):
    """Fused relu(x @ w + b).

    x2d: (M, K) float32 activations.
    w  : (K, N) bfloat16 weight, N % 128 == 0 (pre-padded / pre-cast at init).
    b2 : (1, N) float32 bias.
    Returns (M, out_cols) in `out_dtype` (defaults to x2d.dtype).
    """
    M, K = x2d.shape
    Kw, N = w.shape
    assert K == Kw, (K, Kw)
    assert N % 128 == 0, "weight columns must be pre-padded to a multiple of 128"
    out_cols = N if out_cols is None else out_cols
    out_dtype = x2d.dtype if out_dtype is None else out_dtype

    # Tiny problems: per-grid-step overhead (+ slicing passes) dominate -> plain XLA.
    if M * K * N < (1 << 20):
        y = jnp.dot(x2d.astype(jnp.bfloat16), w, preferred_element_type=jnp.float32)
        y = jnp.maximum(y + b2, 0.0).astype(out_dtype)
        return y if out_cols == N else y[:, :out_cols]

    # Row tile: big enough to amortize per-step overhead / fill the MXU; multiple of 16 so
    # the bf16 LHS tile packs sublanes cleanly.  Ragged M is handled by edge-block masking.
    if tm is None:
        if M >= 1024:
            tm = 512
        elif M >= 512:
            tm = 256
        elif M >= 128:
            tm = 128
        else:
            tm = _round_up(M, 16)
    # Column tile: lane-dense multiple of 128; prefer >= 256 (v6e/v7x MXU is 256 wide).
    if tn is None:
        if N % 512 == 0:
            tn = 512
        elif N % 256 == 0:
            tn = 256
        else:
            tn = 128
        tn = min(tn, N)
    assert N % tn == 0 and tn % 128 == 0 and tm % 8 == 0

    # Row axis OUTER so the activation tile is reused across all column steps; column axis
    # must stay "arbitrary" (resident x tile + pl.when cast); row axis "parallel" so the
    # v7x megacore can shard row tiles across its two TensorCores.
    grid = (pl.cdiv(M, tm), N // tn)

    in_itemsize = jnp.dtype(x2d.dtype).itemsize
    out_itemsize = jnp.dtype(out_dtype).itemsize
    vmem_est = (2 * tm * K * in_itemsize          # double-buffered activation tile
                + tm * K * 2                      # bf16 scratch copy of the tile
                + 2 * K * tn * 2                  # double-buffered bf16 weight tile
                + 2 * tn * 4                      # bias tile
                + 2 * tm * tn * out_itemsize)     # double-buffered output tile
    vmem_limit = int(min(32 * 1024 * 1024, max(16 * 1024 * 1024, 2 * vmem_est)))

    out = pl.pallas_call(
        _linear_bias_relu_kernel,
        out_shape=jax.ShapeDtypeStruct((M, N), out_dtype),
        grid_spec=pltpu.PrefetchScalarGridSpec(
            num_scalar_prefetch=0,
            grid=grid,
            in_specs=[
                pl.BlockSpec((tm, K), lambda i, j: (i, 0)),   # f32 activation row tile
                pl.BlockSpec((K, tn), lambda i, j: (0, j)),   # bf16 weight column tile
                pl.BlockSpec((1, tn), lambda i, j: (0, j)),   # bias tile
            ],
            out_specs=pl.BlockSpec((tm, tn), lambda i, j: (i, j)),
            scratch_shapes=[pltpu.VMEM((tm, K), jnp.bfloat16)],
        ),
        compiler_params=pltpu.CompilerParams(
            dimension_semantics=("parallel", "arbitrary"),
            vmem_limit_bytes=vmem_limit,
        ),
    )(x2d, w, b2)

    return out if out_cols == N else out[:, :out_cols]


class ImageFeatureEncoderFactoryPallas:
    """JAX/Pallas equivalent of ImageFeatureEncoderFactory."""

    def __init__(self, encoder_type: str, in_dim: int, out_dim: int = None,
                 key=None, dtype=jnp.float32):
        self.encoder_type = encoder_type
        self.in_dim = in_dim
        if encoder_type in ("default", "identity"):
            self.out_dim = in_dim
            self.w = None
            self.b = None
        elif encoder_type == "finetune_faster_rcnn_fpn_fc7":
            assert out_dim is not None
            self.out_dim = out_dim
            key = jax.random.PRNGKey(42) if key is None else key
            kw, kb = jax.random.split(key)
            # torch nn.Linear stores weight as (out_dim, in_dim); keep the transposed
            # (in_dim, out_dim) layout for the x @ W^T matmul.  Weights are synthesized
            # here (no fc7_w.pkl / fc7_b.pkl on disk).
            w_torch_layout = (jax.random.normal(kw, (out_dim, in_dim), dtype)
                              * (1.0 / jnp.sqrt(in_dim)))
            w = jnp.transpose(w_torch_layout)                     # (in_dim, out_dim)
            b = jax.random.normal(kb, (out_dim,), dtype) * 0.01

            # Pad output columns to a multiple of 256 ONCE at init (lane-dense stores and
            # >=256-wide RHS tiles for the v6e/v7x MXU) and cast the weight to bf16 ONCE.
            n_pad = _round_up(out_dim, 256)
            if n_pad != out_dim:
                w = jnp.pad(w, ((0, 0), (0, n_pad - out_dim)))
                b = jnp.pad(b, (0, n_pad - out_dim))
            self.n_pad = n_pad
            self.w = w.astype(jnp.bfloat16)                       # (in_dim, n_pad) bf16
            self.b = b.astype(jnp.float32).reshape(1, n_pad)      # (1, n_pad) f32
        else:
            # TODO(synk): 'projection' (ProjectionEmbedding) variant not implemented.
            raise NotImplementedError(f"Unknown Image Encoder: {encoder_type}")

    def __call__(self, image):
        if self.encoder_type in ("default", "identity"):
            return image
        # image: (..., in_dim) -> flatten leading dims, run fused kernel, restore.
        lead = image.shape[:-1]
        x2d = image.reshape(-1, self.in_dim)
        y2d = fc7_linear_relu(x2d, self.w, self.b, out_cols=self.out_dim)
        return y2d.reshape(*lead, self.out_dim)


if __name__ == "__main__":
    key = jax.random.PRNGKey(0)
    # "Awkward" small shapes that still exercise the Pallas path:
    #   M = 2*72 = 144 rows (ragged vs tm=128 -> masked edge block),
    #   out_dim = 240 (not a multiple of 256 -> padded at init, sliced at the end).
    batch, num_boxes, in_dim, out_dim = 2, 72, 256, 240

    image = jax.random.normal(key, (batch, num_boxes, in_dim), jnp.float32)

    enc = ImageFeatureEncoderFactoryPallas(
        "finetune_faster_rcnn_fpn_fc7", in_dim=in_dim, out_dim=out_dim,
        key=jax.random.PRNGKey(1),
    )

    out = jax.block_until_ready(enc(image))
    assert out.shape == (batch, num_boxes, out_dim)

    x2d = image.reshape(-1, in_dim)
    # Reference matching the kernel numerics (bf16 operands, f32 MXU accumulation).
    ref_bf = jnp.maximum(
        jnp.dot(x2d.astype(jnp.bfloat16), enc.w, preferred_element_type=jnp.float32)
        + enc.b, 0.0)[:, :out_dim].reshape(batch, num_boxes, out_dim)
    assert jnp.allclose(out, ref_bf, atol=5e-3, rtol=5e-3)
    # fp32 reference with an explicit tolerance for the bf16 rounding.
    ref_f32 = jnp.maximum(
        x2d @ enc.w.astype(jnp.float32) + enc.b, 0.0
    )[:, :out_dim].reshape(batch, num_boxes, out_dim)
    assert jnp.allclose(out, ref_f32, atol=2e-2, rtol=2e-2)

    # Tiny input -> small-problem fast path (plain XLA), same semantics.
    tiny = jax.random.normal(jax.random.PRNGKey(2), (2, 4, in_dim), jnp.float32)
    tiny_out = jax.block_until_ready(enc(tiny))
    tiny_ref = jnp.maximum(
        tiny.reshape(-1, in_dim) @ enc.w.astype(jnp.float32) + enc.b, 0.0
    )[:, :out_dim].reshape(2, 4, out_dim)
    assert jnp.allclose(tiny_out, tiny_ref, atol=2e-2, rtol=2e-2)

    # Identity path sanity check.
    ident = ImageFeatureEncoderFactoryPallas("identity", in_dim=in_dim)
    assert jnp.array_equal(ident(image), image)

    print("KERNEL_OK")
</pallas_src>

<mosaic_0001>
module attributes {stable_mosaic.version = 11 : i64} {
  func.func @_linear_bias_relu_kernel(%arg0: i32, %arg1: i32, %arg2: memref<128x256xf32, #tpu.memory_space<vmem>>, %arg3: memref<256x256xbf16, #tpu.memory_space<vmem>>, %arg4: memref<1x256xf32, #tpu.memory_space<vmem>>, %arg5: memref<128x256xf32, #tpu.memory_space<vmem>>, %arg6: memref<128x256xbf16, #tpu.memory_space<vmem>>) attributes {dimension_semantics = [#tpu.dimension_semantics<parallel>, #tpu.dimension_semantics<arbitrary>], iteration_bounds = array<i64: 2, 1>, scalar_prefetch = 0 : i64, scratch_operands = 1 : i64, tpu.core_type = #tpu.core_type<tc>, window_params = [{transform_indices = @transform_0, window_bounds = array<i64: 128, 256>}, {transform_indices = @transform_1, window_bounds = array<i64: 256, 256>}, {transform_indices = @transform_2, window_bounds = array<i64: 1, 256>}, {transform_indices = @transform_3, window_bounds = array<i64: 128, 256>}]} {
    %c0_i32 = arith.constant 0 : i32
    %0 = arith.cmpi eq, %arg1, %c0_i32 : i32
    %1 = arith.extui %0 : i1 to i32
    %c0_i32_0 = arith.constant 0 : i32
    %2 = arith.cmpi ne, %1, %c0_i32_0 : i32
    scf.if %2 {
      %c0_9 = arith.constant 0 : index
      %c0_10 = arith.constant 0 : index
      %12 = vector.load %arg2[%c0_9, %c0_10] : memref<128x256xf32, #tpu.memory_space<vmem>>, vector<128x256xf32>
      %13 = arith.truncf %12 : vector<128x256xf32> to vector<128x256xbf16>
      %c0_11 = arith.constant 0 : index
      %c0_12 = arith.constant 0 : index
      %14 = vector.load %arg6[%c0_11, %c0_12] : memref<128x256xbf16, #tpu.memory_space<vmem>>, vector<128x256xbf16>
      tpu.vector_store %arg6[%c0_11, %c0_12], %13 {strides = array<i32>} : memref<128x256xbf16, #tpu.memory_space<vmem>>, vector<128x256xbf16>,
    } else {
    }
    %c0 = arith.constant 0 : index
    %c0_1 = arith.constant 0 : index
    %3 = vector.load %arg6[%c0, %c0_1] : memref<128x256xbf16, #tpu.memory_space<vmem>>, vector<128x256xbf16>
    %c0_2 = arith.constant 0 : index
    %c0_3 = arith.constant 0 : index
    %4 = vector.load %arg3[%c0_2, %c0_3] : memref<256x256xbf16, #tpu.memory_space<vmem>>, vector<256x256xbf16>
    %cst = arith.constant dense<0.000000e+00> : vector<128x256xf32>
    %5 = tpu.matmul %3, %4, %cst {dimension_numbers = #tpu.dot_dimension_numbers<[1], [0], [0], [1], [0, 0, 1, 1], [], []>} : vector<128x256xbf16>, vector<256x256xbf16>, vector<128x256xf32> -> vector<128x256xf32>
    %c0_4 = arith.constant 0 : index
    %c0_5 = arith.constant 0 : index
    %6 = vector.load %arg4[%c0_4, %c0_5] : memref<1x256xf32, #tpu.memory_space<vmem>>, vector<1x256xf32>
    %7 = vector.broadcast %6 : vector<1x256xf32> to vector<128x256xf32>
    %8 = arith.addf %5, %7 : vector<128x256xf32>
    %cst_6 = arith.constant 0.000000e+00 : f32
    %9 = vector.broadcast %cst_6 : f32 to vector<128x256xf32>
    %10 = arith.maximumf %8, %9 : vector<128x256xf32>
    %c0_7 = arith.constant 0 : index
    %c0_8 = arith.constant 0 : index
    %11 = vector.load %arg5[%c0_7, %c0_8] : memref<128x256xf32, #tpu.memory_space<vmem>>, vector<128x256xf32>
    tpu.vector_store %arg5[%c0_7, %c0_8], %10 {strides = array<i32>} : memref<128x256xf32, #tpu.memory_space<vmem>>, vector<128x256xf32>,
    return
  }
  func.func @transform_0(%arg0: i32, %arg1: i32) -> (i32, i32) {
    %c0_i32 = arith.constant 0 : i32
    %c0_i32_0 = arith.constant 0 : i32
    return %arg0, %c0_i32 : i32, i32
  }
  func.func @transform_1(%arg0: i32, %arg1: i32) -> (i32, i32) {
    %c0_i32 = arith.constant 0 : i32
    %c0_i32_0 = arith.constant 0 : i32
    return %c0_i32, %arg1 : i32, i32
  }
  func.func @transform_2(%arg0: i32, %arg1: i32) -> (i32, i32) {
    %c0_i32 = arith.constant 0 : i32
    %c0_i32_0 = arith.constant 0 : i32
    return %c0_i32, %arg1 : i32, i32
  }
  func.func @transform_3(%arg0: i32, %arg1: i32) -> (i32, i32) {
    %c0_i32 = arith.constant 0 : i32
    return %arg0, %arg1 : i32, i32
  }
}

</mosaic_0001>

<llo_original>
// kernel: tpu_custom_call.1
$region0: #{tpu_custom_call.1}
  #allocation0 [shape = 'u32[]', space=smem, size = 0x4, offset = 0x4, fixed_abs, tag = 'smem constant byte address 0x4 - core index']
  #allocation1 [shape = 'u32[144,128]{1,0:T(1,128)}', space=vmem, size = 0x12000, scoped, tag = 'internal scratch']
  #allocation2 [shape = 'bf16[128,256]{1,0:T(16,128)(2,1)}', space=vmem, size = 0x10000, scoped, tag = 'scratch operand']
  %s0 = inlined_call_operand.hbm [shape: f32[144,256], index: 0, kind: input, shape index: {}]
  %s1 = inlined_call_operand.hbm [shape: bf16[256,256], index: 1, kind: input, shape index: {}]
  %s2 = inlined_call_operand.vmem [shape: f32[1,256], index: 2, kind: input, shape index: {}]
  %s3 = inlined_call_operand.hbm [shape: f32[144,256], index: 3, kind: output, shape index: {}]
  %s4 = sld [smem:[#allocation0]]
  $region57: #{tpu_custom_call.1} parent=0
    _
  %s6 = ssub.s32 1, %s4
  %s7 = scalar_select 0, %s6, %s4
  $region1: #{tpu_custom_call.1} parent=0
    #allocation3 [shape = 'u8[262144]{0}', space=vmem, size = 0x40000, scoped, tag = 'input window, operand 0']
    #allocation4 [shape = 's32[2]{0}', space=sflag, size = 0x8, scoped, tag = 'scoped memory for tpu_custom_call.1']
    #allocation5 [shape = 's32[2]{0}', space=sflag, size = 0x8, scoped, tag = 'scoped memory for tpu_custom_call.1']
    #allocation6 [shape = 'u8[131072]{0}', space=vmem, size = 0x20000, scoped, tag = 'input window, operand 1, single buffered']
    #allocation7 [shape = 's32[1]{0}', space=sflag, size = 0x4, scoped, tag = 'scoped memory for tpu_custom_call.1']
    #allocation8 [shape = 'u8[262144]{0}', space=vmem, size = 0x40000, scoped, tag = 'output window, operand 0']
    %8 = vsyncpa [#allocation4], 0
    %s9 = scalar_lea.sflag [#allocation4], 1
    %10 = vsyncpa %s9, 0
    %11 = vsyncpa [#allocation7], 0
    %12 = vsyncpa [#allocation5], 0
    %s13 = scalar_lea.sflag [#allocation5], 1
    %14 = vsyncpa %s13, 0
    loop: start=0, step=1, limit=4
    $region2: #{tpu_custom_call.1} parent=1 // loop_pre_header
      _
    $region3: #{tpu_custom_call.1} parent=1 // loop_header
      %s16 = sphi 0, %s20
      %p17 = scmp.ge.s32.totalorder %s16, 4
      %s23 = sphi 0, %s35
      %s24 = sphi 0, %s31
      %s25 = sphi 0, %s23
      %s26 = sphi 0, %s24
      %s27 = sphi 0, %s25
      %s28 = sphi 0, %s26
      %s38 = sphi 0, %s40
      %s41 = sphi 0, %s38
      %s42 = sphi 0, %s41
      %s58 = sphi 0, %s42
      %s64 = sphi 0, %s66
      %s67 = sphi 0, %s64
      %s68 = sphi 0, %s67
      %s84 = sphi 0, %s68
      %s90 = sphi 0, %s92
      %s93 = sphi 0, %s90
      %s94 = sphi 0, %s93
      %s110 = sphi 0, %s94
      %s118 = sphi 0, %s120
      %s121 = sphi 0, %s118
      %s122 = sphi 0, %s121
      %s138 = sphi 0, %s122
    $region4: #{tpu_custom_call.1} parent=1 // loop_header_branch
      %19 = sbr.rel (%p17) target = $region8
    $region5: #{tpu_custom_call.1} parent=1 // loop_body
      %s21 = ssub.s32 %s16, 1
      %s22 = ssub.s32 %s16, 2
      %s29 = sadd.s32 1, %s24
      %p30 = scmp.ge.s32.totalorder %s29, 1
      %s31 = scalar_select %p30, 0, %s29
      %s32 = sadd.s32 1, %s23
      %s33 = scalar_select %p30, %s32, %s23
      %p34 = scmp.ge.s32.totalorder %s33, 2
      %s35 = scalar_select %p34, 0, %s33
      %s36 = ssub.s32 %s23, %s35
      %p37 = scmp.eq.s32.totalorder %s36, 0
      %s39 = sadd.s32 %s38, 1
      %s40 = scalar_select %p37, %s38, %s39
      %p43 = pneg %p37
      %p44 = scmp.eq.s32.totalorder %s16, 1
      %p45 = por %p43, %p44
      %p46 = scmp.ne.s32.totalorder %s38, %s41
      %p47 = scmp.eq.s32.totalorder %s16, 0
      %p48 = por %p46, %p47
      %p49 = scmp.ne.s32.totalorder %s38, %s41
      %p50 = scmp.eq.s32.totalorder %s21, 1
      %p51 = por %p49, %p50
      %p52 = scmp.ne.s32.totalorder %s41, %s42
      %p53 = scmp.eq.s32.totalorder %s21, 0
      %p54 = por %p52, %p53
      %p55 = scmp.ne.s32.totalorder %s41, %s42
      %p56 = scmp.eq.s32.totalorder %s22, 1
      %p57 = por %p55, %p56
      %p59 = scmp.ne.s32.totalorder %s42, %s58
      %p60 = scmp.eq.s32.totalorder %s22, 0
      %p61 = por %p59, %p60
      %s62 = ssub.s32 %s24, %s31
      %p63 = scmp.eq.s32.totalorder %s62, 0
      %s65 = sadd.s32 %s64, 1
      %s66 = scalar_select %p63, %s64, %s65
      %p69 = pneg %p63
      %p70 = scmp.eq.s32.totalorder %s16, 1
      %p71 = por %p69, %p70
      %p72 = scmp.ne.s32.totalorder %s64, %s67
      %p73 = scmp.eq.s32.totalorder %s16, 0
      %p74 = por %p72, %p73
      %p75 = scmp.ne.s32.totalorder %s64, %s67
      %p76 = scmp.eq.s32.totalorder %s21, 1
      %p77 = por %p75, %p76
      %p78 = scmp.ne.s32.totalorder %s67, %s68
      %p79 = scmp.eq.s32.totalorder %s21, 0
      %p80 = por %p78, %p79
      %p81 = scmp.ne.s32.totalorder %s67, %s68
      %p82 = scmp.eq.s32.totalorder %s22, 1
      %p83 = por %p81, %p82
      %p85 = scmp.ne.s32.totalorder %s68, %s84
      %p86 = scmp.eq.s32.totalorder %s22, 0
      %p87 = por %p85, %p86
      %s88 = ssub.s32 %s24, %s31
      %p89 = scmp.eq.s32.totalorder %s88, 0
      %s91 = sadd.s32 %s90, 1
      %s92 = scalar_select %p89, %s90, %s91
      %p95 = pneg %p89
      %p96 = scmp.eq.s32.totalorder %s16, 1
      %p97 = por %p95, %p96
      %p98 = scmp.ne.s32.totalorder %s90, %s93
      %p99 = scmp.eq.s32.totalorder %s16, 0
      %p100 = por %p98, %p99
      %p101 = scmp.ne.s32.totalorder %s90, %s93
      %p102 = scmp.eq.s32.totalorder %s21, 1
      %p103 = por %p101, %p102
      %p104 = scmp.ne.s32.totalorder %s93, %s94
      %p105 = scmp.eq.s32.totalorder %s21, 0
      %p106 = por %p104, %p105
      %p107 = scmp.ne.s32.totalorder %s93, %s94
      %p108 = scmp.eq.s32.totalorder %s22, 1
      %p109 = por %p107, %p108
      %p111 = scmp.ne.s32.totalorder %s94, %s110
      %p112 = scmp.eq.s32.totalorder %s22, 0
      %p113 = por %p111, %p112
      %s114 = ssub.s32 %s23, %s35
      %s115 = ssub.s32 %s24, %s31
      %s116 = sor.u32 %s114, %s115
      %p117 = scmp.eq.s32.totalorder %s116, 0
      %s119 = sadd.s32 %s118, 1
      %s120 = scalar_select %p117, %s118, %s119
      %p123 = pneg %p117
      %p124 = scmp.eq.s32.totalorder %s16, 1
      %p125 = por %p123, %p124
      %p126 = scmp.ne.s32.totalorder %s118, %s121
      %p127 = scmp.eq.s32.totalorder %s16, 0
      %p128 = por %p126, %p127
      %p129 = scmp.ne.s32.totalorder %s118, %s121
      %p130 = scmp.eq.s32.totalorder %s21, 1
      %p131 = por %p129, %p130
      %p132 = scmp.ne.s32.totalorder %s121, %s122
      %p133 = scmp.eq.s32.totalorder %s21, 0
      %p134 = por %p132, %p133
      %p135 = scmp.ne.s32.totalorder %s121, %s122
      %p136 = scmp.eq.s32.totalorder %s22, 1
      %p137 = por %p135, %p136
      %p139 = scmp.ne.s32.totalorder %s122, %s138
      %p140 = scmp.eq.s32.totalorder %s22, 0
      %p141 = por %p139, %p140
      %p142 = scmp.le.s32.totalorder 1, %s16
      %p143 = scmp.lt.s32.totalorder %s16, 3
      %p144 = pnand %p142, %p143
      %p145 = pneg %p144
      // Predicated region
      $region9: #{tpu_custom_call.1} parent=5 // pred_check
        _
      $region10: #{tpu_custom_call.1} parent=5 // pred_check_branch
        %147 = sbr.rel (%p144) target = $region12
      $region11: #{tpu_custom_call.1} parent=5 // pred_region
        %s148 = ssub.s32 %s16, 1
        // Predicated region
        $region13: #{tpu_custom_call.1} parent=11 // pred_check
          %p149 = pneg %p80
        $region14: #{tpu_custom_call.1} parent=11 // pred_check_branch
          %151 = sbr.rel (%p149) target = $region16
        $region15: #{tpu_custom_call.1} parent=11 // pred_region
          %s152 = smul.u32 2, %s26
          %s154 = ssub.s32 4096, 4096
          %155 = vsyncadd [#allocation7], %s154
          %s156 = smul.addr %s152, 64
          %s157 = scalar_lea.hbm %s1, %s156
          %s158 = sshll.u32 [#allocation6], 4
          %s159 = int_to_ptr.vmem [resolvable:$true] %s158
          %164 = dma.hbm_to_vmem [thread:$0]  %s157, 4096, %s159, [#allocation7], 128, 128, 8
        $region16: #{tpu_custom_call.1} parent=11 // pred_fallthru
          _
        // Predicated region
        $region17: #{tpu_custom_call.1} parent=11 // pred_check
          %p165 = pneg %p106
        $region18: #{tpu_custom_call.1} parent=11 // pred_check_branch
          %167 = sbr.rel (%p165) target = $region20
        $region19: #{tpu_custom_call.1} parent=11 // pred_region
          %s168 = smul.u32 2, %s26
          %p169 = scmp.lt.s32.totalorder %s168, 1
          %s170 = scalar_select %p169, %s168, 1
          %s171 = scalar_lea.vmem %s2, %s170
          %s172 = smul.u32 2, %s26
        $region20: #{tpu_custom_call.1} parent=11 // pred_fallthru
          _
      $region12: #{tpu_custom_call.1} parent=5 // pred_fallthru
        _
      %p173 = scmp.lt.s32.totalorder %s16, 2
      // Predicated region
      $region21: #{tpu_custom_call.1} parent=5 // pred_check
        %p174 = pneg %p173
      $region22: #{tpu_custom_call.1} parent=5 // pred_check_branch
        %176 = sbr.rel (%p174) target = $region24
      $region23: #{tpu_custom_call.1} parent=5 // pred_region
        // Predicated region
        $region25: #{tpu_custom_call.1} parent=23 // pred_check
          %p177 = pneg %p48
        $region26: #{tpu_custom_call.1} parent=23 // pred_check_branch
          %179 = sbr.rel (%p177) target = $region28
        $region27: #{tpu_custom_call.1} parent=23 // pred_region
          %s180 = sand.u32 %s38, 1
          %s181 = scalar_lea.sflag [#allocation4], %s180
          %s182 = sand.u32 %s38, 1
          %s183 = smul.addr %s182, 256
          %s184 = scalar_lea.vmem [#allocation3], %s183
          %s185 = smul.u32 16, %s23
          %s186 = ssub.s32 18, %s185
          %p187 = scmp.lt.s32.totalorder %s186, 16
          %s188 = scalar_select %p187, %s186, 16
          %s189 = smul.u32 128, %s188
          %s190 = smul.u32 %s189, 2
          %s192 = ssub.s32 4096, %s190
          %193 = vsyncadd %s181, %s192
          %p194 = scmp.ne.s32.totalorder 0, %s190
          %s195 = smul.addr %s185, 2
          %s196 = smul.addr %s195, 128
          %s197 = scalar_lea.hbm %s0, %s196
          %s198 = smul.u32 16, %s188
          %s199 = sshll.u32 %s184, 4
          %s200 = int_to_ptr.vmem [resolvable:$true] %s199
          %s201 = sshll.u32 %s198, 4
          %205 = dma.hbm_to_vmem [thread:$0]  (%p194), %s197, %s201, %s200, %s181, 256, 256, 16
        $region28: #{tpu_custom_call.1} parent=23 // pred_fallthru
          _
      $region24: #{tpu_custom_call.1} parent=5 // pred_fallthru
        _
      %p206 = scmp.le.s32.totalorder 1, %s16
      %p207 = scmp.lt.s32.totalorder %s16, 3
      %p208 = pnand %p206, %p207
      %p209 = pneg %p208
      // Predicated region
      $region29: #{tpu_custom_call.1} parent=5 // pred_check
        _
      $region30: #{tpu_custom_call.1} parent=5 // pred_check_branch
        %211 = sbr.rel (%p208) target = $region32
      $region31: #{tpu_custom_call.1} parent=5 // pred_region
        %s212 = ssub.s32 %s16, 1
        %s213 = sand.u32 %s41, 1
        %s214 = scalar_lea.sflag [#allocation4], %s213
        %s215 = sand.u32 %s41, 1
        %s216 = smul.addr %s215, 256
        %s217 = scalar_lea.vmem [#allocation3], %s216
        // Predicated region
        $region33: #{tpu_custom_call.1} parent=31 // pred_check
          %p218 = pneg %p54
        $region34: #{tpu_custom_call.1} parent=31 // pred_check_branch
          %220 = sbr.rel (%p218) target = $region36
        $region35: #{tpu_custom_call.1} parent=31 // pred_region
          %221 = dma.done %s214, 4096
        $region36: #{tpu_custom_call.1} parent=31 // pred_fallthru
          _
        // Predicated region
        $region37: #{tpu_custom_call.1} parent=31 // pred_check
          %p222 = pneg %p80
        $region38: #{tpu_custom_call.1} parent=31 // pred_check_branch
          %224 = sbr.rel (%p222) target = $region40
        $region39: #{tpu_custom_call.1} parent=31 // pred_region
          %225 = dma.done [#allocation7], 4096
        $region40: #{tpu_custom_call.1} parent=31 // pred_fallthru
          _
        %s226 = sand.u32 %s41, 1
        %s227 = scalar_lea.sflag [#allocation4], %s226
        %s228 = sand.u32 %s41, 1
        %s229 = smul.addr %s228, 256
        %s230 = scalar_lea.vmem [#allocation3], %s229
        %p231 = pneg %p54
        %p232 = pneg %p51
        %p233 = pneg %p80
        %p234 = pneg %p77
        %s235 = smul.u32 2, %s26
        %p236 = scmp.lt.s32.totalorder %s235, 1
        %s237 = scalar_select %p236, %s235, 1
        %s238 = scalar_lea.vmem %s2, %s237
        %p239 = pneg %p106
        %p240 = pneg %p103
        %p241 = pneg %p134
        %p242 = pneg %p131
        %s243 = sand.u32 %s121, 1
        %s244 = scalar_lea.sflag [#allocation5], %s243
        %s245 = sand.u32 %s121, 1
        %s246 = smul.addr %s245, 256
        %s247 = scalar_lea.vmem [#allocation8], %s246
        %s248 = smul.u32 16, %s25
        %s249 = ssub.s32 18, %s248
        %p250 = scmp.lt.s32.totalorder %s249, 16
        %s251 = scalar_select %p250, %s249, 16
        %s252 = smul.u32 128, %s251
        %s253 = smul.u32 %s252, 2
        %s254 = smul.u32 2, %s26
        %s255 = smul.u32 2, %s26
        %p256 = scmp.lt.s32.totalorder %s255, 1
        %s257 = scalar_select %p256, %s255, 1
        %s258 = scalar_lea.vmem %s2, %s257
        %s259 = smul.u32 2, %s26
        %s260 = smul.u32 16, %s25
        %s261 = smul.u32 2, %s26
        %s262 = ssub.s32 18, %s260
        %p263 = scmp.lt.s32.totalorder %s262, 16
        %s264 = scalar_select %p263, %s262, 16
        %s265 = smul.u32 128, %s264
        %s266 = smul.u32 %s265, 2
        %p267 = scmp.eq.s32.totalorder %s26, 0
        // Predicated region
        $region41: #{tpu_custom_call.1} parent=31 // pred_check
          %p268 = pneg %p267
        $region42: #{tpu_custom_call.1} parent=31 // pred_check_branch
          %270 = sbr.rel (%p268) target = $region44
        $region43: #{tpu_custom_call.1} parent=31 // pred_region
          %v271 = vld [vmem:[%s217] sm:$0xff]
          %v272 = vld [vmem:[%s217 + $0x8] sm:$0xff]
          %v273 = vld [vmem:[%s217 + $0x10] sm:$0xff]
          %v274 = vld [vmem:[%s217 + $0x18] sm:$0xff]
          %v275 = vld [vmem:[%s217 + $0x20] sm:$0xff]
          %v276 = vld [vmem:[%s217 + $0x28] sm:$0xff]
          %v277 = vld [vmem:[%s217 + $0x30] sm:$0xff]
          %v278 = vld [vmem:[%s217 + $0x38] sm:$0xff]
          %v279 = vld [vmem:[%s217 + $0x40] sm:$0xff]
          %v280 = vld [vmem:[%s217 + $0x48] sm:$0xff]
          %v281 = vld [vmem:[%s217 + $0x50] sm:$0xff]
          %v282 = vld [vmem:[%s217 + $0x58] sm:$0xff]
          %v283 = vld [vmem:[%s217 + $0x60] sm:$0xff]
          %v284 = vld [vmem:[%s217 + $0x68] sm:$0xff]
          %v285 = vld [vmem:[%s217 + $0x70] sm:$0xff]
          %v286 = vld [vmem:[%s217 + $0x78] sm:$0xff]
          %v287 = vld [vmem:[%s217 + $0x80] sm:$0xff]
          %v288 = vld [vmem:[%s217 + $0x88] sm:$0xff]
          %v289 = vld [vmem:[%s217 + $0x90] sm:$0xff]
          %v290 = vld [vmem:[%s217 + $0x98] sm:$0xff]
          %v291 = vld [vmem:[%s217 + $0xa0] sm:$0xff]
          %v292 = vld [vmem:[%s217 + $0xa8] sm:$0xff]
          %v293 = vld [vmem:[%s217 + $0xb0] sm:$0xff]
          %v294 = vld [vmem:[%s217 + $0xb8] sm:$0xff]
          %v295 = vld [vmem:[%s217 + $0xc0] sm:$0xff]
          %v296 = vld [vmem:[%s217 + $0xc8] sm:$0xff]
          %v297 = vld [vmem:[%s217 + $0xd0] sm:$0xff]
          %v298 = vld [vmem:[%s217 + $0xd8] sm:$0xff]
          %v299 = vld [vmem:[%s217 + $0xe0] sm:$0xff]
          %v300 = vld [vmem:[%s217 + $0xe8] sm:$0xff]
          %v301 = vld [vmem:[%s217 + $0xf0] sm:$0xff]
          %v302 = vld [vmem:[%s217 + $0xf8] sm:$0xff]
          %v303 = vpack.c.bf16 %v273, %v271
          %v304 = vpack.c.bf16 %v274, %v272
          %v305 = vpack.c.bf16 %v277, %v275
          %v306 = vpack.c.bf16 %v278, %v276
          %v307 = vpack.c.bf16 %v281, %v279
          %v308 = vpack.c.bf16 %v282, %v280
          %v309 = vpack.c.bf16 %v285, %v283
          %v310 = vpack.c.bf16 %v286, %v284
          %v311 = vpack.c.bf16 %v289, %v287
          %v312 = vpack.c.bf16 %v290, %v288
          %v313 = vpack.c.bf16 %v293, %v291
          %v314 = vpack.c.bf16 %v294, %v292
          %v315 = vpack.c.bf16 %v297, %v295
          %v316 = vpack.c.bf16 %v298, %v296
          %v317 = vpack.c.bf16 %v301, %v299
          %v318 = vpack.c.bf16 %v302, %v300
          %319 = vst [vmem:[#allocation2] sm:$0xff] %v303
          %320 = vst [vmem:[#allocation2 + $0x8] sm:$0xff] %v304
          %321 = vst [vmem:[#allocation2 + $0x10] sm:$0xff] %v305
          %322 = vst [vmem:[#allocation2 + $0x18] sm:$0xff] %v306
          %323 = vst [vmem:[#allocation2 + $0x20] sm:$0xff] %v307
          %324 = vst [vmem:[#allocation2 + $0x28] sm:$0xff] %v308
          %325 = vst [vmem:[#allocation2 + $0x30] sm:$0xff] %v309
          %326 = vst [vmem:[#allocation2 + $0x38] sm:$0xff] %v310
          %327 = vst [vmem:[#allocation2 + $0x40] sm:$0xff] %v311
          %328 = vst [vmem:[#allocation2 + $0x48] sm:$0xff] %v312
          %329 = vst [vmem:[#allocation2 + $0x50] sm:$0xff] %v313
          %330 = vst [vmem:[#allocation2 + $0x58] sm:$0xff] %v314
          %331 = vst [vmem:[#allocation2 + $0x60] sm:$0xff] %v315
          %332 = vst [vmem:[#allocation2 + $0x68] sm:$0xff] %v316
          %333 = vst [vmem:[#allocation2 + $0x70] sm:$0xff] %v317
          %334 = vst [vmem:[#allocation2 + $0x78] sm:$0xff] %v318
        $region44: #{tpu_custom_call.1} parent=31 // pred_fallthru
          _
        %v335 = vld [vmem:[#allocation2] sm:$0xff]
        %v336 = vld [vmem:[#allocation2 + $0x8] sm:$0xff]
        %v337 = vld [vmem:[#allocation2 + $0x10] sm:$0xff]
        %v338 = vld [vmem:[#allocation2 + $0x18] sm:$0xff]
        %v339 = vld [vmem:[#allocation2 + $0x20] sm:$0xff]
        %v340 = vld [vmem:[#allocation2 + $0x28] sm:$0xff]
        %v341 = vld [vmem:[#allocation2 + $0x30] sm:$0xff]
        %v342 = vld [vmem:[#allocation2 + $0x38] sm:$0xff]
        %v343 = vld [vmem:[#allocation2 + $0x40] sm:$0xff]
        %v344 = vld [vmem:[#allocation2 + $0x48] sm:$0xff]
        %v345 = vld [vmem:[#allocation2 + $0x50] sm:$0xff]
        %v346 = vld [vmem:[#allocation2 + $0x58] sm:$0xff]
        %v347 = vld [vmem:[#allocation2 + $0x60] sm:$0xff]
        %v348 = vld [vmem:[#allocation2 + $0x68] sm:$0xff]
        %v349 = vld [vmem:[#allocation2 + $0x70] sm:$0xff]
        %v350 = vld [vmem:[#allocation2 + $0x78] sm:$0xff]
        %v351 = vld [vmem:[#allocation6] sm:$0xff]
        %v352 = vld [vmem:[#allocation6 + $0x8] sm:$0xff]
        %v353 = vld [vmem:[#allocation6 + $0x10] sm:$0xff]
        %v354 = vld [vmem:[#allocation6 + $0x18] sm:$0xff]
        %v355 = vld [vmem:[#allocation6 + $0x20] sm:$0xff]
        %v356 = vld [vmem:[#allocation6 + $0x28] sm:$0xff]
        %v357 = vld [vmem:[#allocation6 + $0x30] sm:$0xff]
        %v358 = vld [vmem:[#allocation6 + $0x38] sm:$0xff]
        %v359 = vld [vmem:[#allocation6 + $0x40] sm:$0xff]
        %v360 = vld [vmem:[#allocation6 + $0x48] sm:$0xff]
        %v361 = vld [vmem:[#allocation6 + $0x50] sm:$0xff]
        %v362 = vld [vmem:[#allocation6 + $0x58] sm:$0xff]
        %v363 = vld [vmem:[#allocation6 + $0x60] sm:$0xff]
        %v364 = vld [vmem:[#allocation6 + $0x68] sm:$0xff]
        %v365 = vld [vmem:[#allocation6 + $0x70] sm:$0xff]
        %v366 = vld [vmem:[#allocation6 + $0x78] sm:$0xff]
        %v367 = vld [vmem:[#allocation6 + $0x80] sm:$0xff]
        %v368 = vld [vmem:[#allocation6 + $0x88] sm:$0xff]
        %v369 = vld [vmem:[#allocation6 + $0x90] sm:$0xff]
        %v370 = vld [vmem:[#allocation6 + $0x98] sm:$0xff]
        %v371 = vld [vmem:[#allocation6 + $0xa0] sm:$0xff]
        %v372 = vld [vmem:[#allocation6 + $0xa8] sm:$0xff]
        %v373 = vld [vmem:[#allocation6 + $0xb0] sm:$0xff]
        %v374 = vld [vmem:[#allocation6 + $0xb8] sm:$0xff]
        %v375 = vld [vmem:[#allocation6 + $0xc0] sm:$0xff]
        %v376 = vld [vmem:[#allocation6 + $0xc8] sm:$0xff]
        %v377 = vld [vmem:[#allocation6 + $0xd0] sm:$0xff]
        %v378 = vld [vmem:[#allocation6 + $0xd8] sm:$0xff]
        %v379 = vld [vmem:[#allocation6 + $0xe0] sm:$0xff]
        %v380 = vld [vmem:[#allocation6 + $0xe8] sm:$0xff]
        %v381 = vld [vmem:[#allocation6 + $0xf0] sm:$0xff]
        %v382 = vld [vmem:[#allocation6 + $0xf8] sm:$0xff]
        %v383 = vld [vmem:[%s258] sm:$0x3]
        %v385 = vlaneseq
        %v386 = vshrl.u32 %v385, 7
        %v387 = vsub.s32 0, %v386
        %v388 = vrot.slane %v383, %v387
        %v389 = vlaneseq
        %v390 = vshrl.u32 %v389, 7
        %v391 = vsub.s32 1, %v390
        %v392 = vrot.slane %v383, %v391
        %v427 = vunpack.c.l.b16 %v351
        %v428 = vunpack.c.h.b16 %v351
        %v429 = vunpack.c.l.b16 %v352
        %v430 = vunpack.c.h.b16 %v352
        %v431 = vunpack.c.l.b16 %v353
        %v432 = vunpack.c.h.b16 %v353
        %v433 = vunpack.c.l.b16 %v354
        %v434 = vunpack.c.h.b16 %v354
        %v435 = vunpack.c.l.b16 %v355
        %v436 = vunpack.c.h.b16 %v355
        %v437 = vunpack.c.l.b16 %v356
        %v438 = vunpack.c.h.b16 %v356
        %v439 = vunpack.c.l.b16 %v357
        %v440 = vunpack.c.h.b16 %v357
        %v441 = vunpack.c.l.b16 %v358
        %v442 = vunpack.c.h.b16 %v358
        %v443 = vunpack.c.l.b16 %v359
        %v444 = vunpack.c.h.b16 %v359
        %v445 = vunpack.c.l.b16 %v360
        %v446 = vunpack.c.h.b16 %v360
        %v447 = vunpack.c.l.b16 %v361
        %v448 = vunpack.c.h.b16 %v361
        %v449 = vunpack.c.l.b16 %v362
        %v450 = vunpack.c.h.b16 %v362
        %v451 = vunpack.c.l.b16 %v363
        %v452 = vunpack.c.h.b16 %v363
        %v453 = vunpack.c.l.b16 %v364
        %v454 = vunpack.c.h.b16 %v364
        %v455 = vunpack.c.l.b16 %v365
        %v456 = vunpack.c.h.b16 %v365
        %v457 = vunpack.c.l.b16 %v366
        %v458 = vunpack.c.h.b16 %v366
        %v459 = vunpack.c.l.b16 %v367
        %v460 = vunpack.c.h.b16 %v367
        %v461 = vunpack.c.l.b16 %v368
        %v462 = vunpack.c.h.b16 %v368
        %v463 = vunpack.c.l.b16 %v369
        %v464 = vunpack.c.h.b16 %v369
        %v465 = vunpack.c.l.b16 %v370
        %v466 = vunpack.c.h.b16 %v370
        %v467 = vunpack.c.l.b16 %v371
        %v468 = vunpack.c.h.b16 %v371
        %v469 = vunpack.c.l.b16 %v372
        %v470 = vunpack.c.h.b16 %v372
        %v471 = vunpack.c.l.b16 %v373
        %v472 = vunpack.c.h.b16 %v373
        %v473 = vunpack.c.l.b16 %v374
        %v474 = vunpack.c.h.b16 %v374
        %v475 = vunpack.c.l.b16 %v375
        %v476 = vunpack.c.h.b16 %v375
        %v477 = vunpack.c.l.b16 %v376
        %v478 = vunpack.c.h.b16 %v376
        %v479 = vunpack.c.l.b16 %v377
        %v480 = vunpack.c.h.b16 %v377
        %v481 = vunpack.c.l.b16 %v378
        %v482 = vunpack.c.h.b16 %v378
        %v483 = vunpack.c.l.b16 %v379
        %v484 = vunpack.c.h.b16 %v379
        %v485 = vunpack.c.l.b16 %v380
        %v486 = vunpack.c.h.b16 %v380
        %v487 = vunpack.c.l.b16 %v381
        %v488 = vunpack.c.h.b16 %v381
        %v489 = vunpack.c.l.b16 %v382
        %v490 = vunpack.c.h.b16 %v382
        %v491 = vpack.c.b16 %v429, %v427
        %v492 = vpack.c.b16 %v430, %v428
        %v493 = vpack.c.b16 %v433, %v431
        %v494 = vpack.c.b16 %v434, %v432
        %v495 = vpack.c.b16 %v437, %v435
        %v496 = vpack.c.b16 %v438, %v436
        %v497 = vpack.c.b16 %v441, %v439
        %v498 = vpack.c.b16 %v442, %v440
        %v499 = vpack.c.b16 %v445, %v443
        %v500 = vpack.c.b16 %v446, %v444
        %v501 = vpack.c.b16 %v449, %v447
        %v502 = vpack.c.b16 %v450, %v448
        %v503 = vpack.c.b16 %v453, %v451
        %v504 = vpack.c.b16 %v454, %v452
        %v505 = vpack.c.b16 %v457, %v455
        %v506 = vpack.c.b16 %v458, %v456
        %v507 = vpack.c.b16 %v461, %v459
        %v508 = vpack.c.b16 %v462, %v460
        %v509 = vpack.c.b16 %v465, %v463
        %v510 = vpack.c.b16 %v466, %v464
        %v511 = vpack.c.b16 %v469, %v467
        %v512 = vpack.c.b16 %v470, %v468
        %v513 = vpack.c.b16 %v473, %v471
        %v514 = vpack.c.b16 %v474, %v472
        %v515 = vpack.c.b16 %v477, %v475
        %v516 = vpack.c.b16 %v478, %v476
        %v517 = vpack.c.b16 %v481, %v479
        %v518 = vpack.c.b16 %v482, %v480
        %v519 = vpack.c.b16 %v485, %v483
        %v520 = vpack.c.b16 %v486, %v484
        %v521 = vpack.c.b16 %v489, %v487
        %v522 = vpack.c.b16 %v490, %v488
        %555 = vmatprep.subr.bf16.mxu0 %v492
        %556 = vmatpush1.bf16.msra.mxu0 %v491
        %557 = vmatprep.subr.bf16.mxu0 %v494
        %558 = vmatpush1.bf16.msra.mxu0 %v493
        %559 = vmatprep.subr.bf16.mxu0 %v496
        %560 = vmatpush1.bf16.msra.mxu0 %v495
        %561 = vmatprep.subr.bf16.mxu0 %v498
        %562 = vmatpush1.bf16.msra.mxu0 %v497
        %563 = vmatprep.subr.bf16.mxu0 %v500
        %564 = vmatpush1.bf16.msra.mxu0 %v499
        %565 = vmatprep.subr.bf16.mxu0 %v502
        %566 = vmatpush1.bf16.msra.mxu0 %v501
        %567 = vmatprep.subr.bf16.mxu0 %v504
        %568 = vmatpush1.bf16.msra.mxu0 %v503
        %569 = vmatprep.subr.bf16.mxu0 %v506
        %570 = vmatpush1.bf16.msra.mxu0 %v505
        %571 = vmatprep.subr.bf16.mxu0 %v508
        %572 = vmatpush1.bf16.msra.mxu0 %v507
        %573 = vmatprep.subr.bf16.mxu0 %v510
        %574 = vmatpush1.bf16.msra.mxu0 %v509
        %575 = vmatprep.subr.bf16.mxu0 %v512
        %576 = vmatpush1.bf16.msra.mxu0 %v511
        %577 = vmatprep.subr.bf16.mxu0 %v514
        %578 = vmatpush1.bf16.msra.mxu0 %v513
        %579 = vmatprep.subr.bf16.mxu0 %v516
        %580 = vmatpush1.bf16.msra.mxu0 %v515
        %581 = vmatprep.subr.bf16.mxu0 %v518
        %582 = vmatpush1.bf16.msra.mxu0 %v517
        %583 = vmatprep.subr.bf16.mxu0 %v520
        %584 = vmatpush1.bf16.msra.mxu0 %v519
        %585 = vmatprep.subr.bf16.mxu0 %v522
        %586 = vmatpush1.bf16.msra.mxu0 %v521
        %587 = vmatprep.mubr.bf16.mxu0 %v336
        %588 = vmatmul.mubr.bf16.gmra.mrb[0].mxu0 %v335
        %v589 = vpop.f32.mrb[0].mxu0
        %v590 = vadd.f32 %v388, %v589
        %v591 = vpop.f32.mrb[0].mxu0
        %v592 = vadd.f32 %v392, %v591
        %v593 = vpop.f32.mrb[0].mxu0
        %v594 = vadd.f32 %v388, %v593
        %v595 = vpop.f32.mrb[0].mxu0
        %v596 = vadd.f32 %v392, %v595
        %597 = vmatprep.mubr.bf16.mxu0 %v338
        %598 = vmatmul.mubr.bf16.gmra.mrb[0].mxu0 %v337
        %v599 = vpop.f32.mrb[0].mxu0
        %v600 = vadd.f32 %v388, %v599
        %v601 = vpop.f32.mrb[0].mxu0
        %v602 = vadd.f32 %v392, %v601
        %v603 = vpop.f32.mrb[0].mxu0
        %v604 = vadd.f32 %v388, %v603
        %v605 = vpop.f32.mrb[0].mxu0
        %v606 = vadd.f32 %v392, %v605
        %607 = vmatprep.mubr.bf16.mxu0 %v340
        %608 = vmatmul.mubr.bf16.gmra.mrb[0].mxu0 %v339
        %v609 = vpop.f32.mrb[0].mxu0
        %v610 = vadd.f32 %v388, %v609
        %v611 = vpop.f32.mrb[0].mxu0
        %v612 = vadd.f32 %v392, %v611
        %v613 = vpop.f32.mrb[0].mxu0
        %v614 = vadd.f32 %v388, %v613
        %v615 = vpop.f32.mrb[0].mxu0
        %v616 = vadd.f32 %v392, %v615
        %617 = vmatprep.mubr.bf16.mxu0 %v342
        %618 = vmatmul.mubr.bf16.gmra.mrb[0].mxu0 %v341
        %v619 = vpop.f32.mrb[0].mxu0
        %v620 = vadd.f32 %v388, %v619
        %v621 = vpop.f32.mrb[0].mxu0
        %v622 = vadd.f32 %v392, %v621
        %v623 = vpop.f32.mrb[0].mxu0
        %v624 = vadd.f32 %v388, %v623
        %v625 = vpop.f32.mrb[0].mxu0
        %v626 = vadd.f32 %v392, %v625
        %627 = vmatprep.mubr.bf16.mxu0 %v344
        %628 = vmatmul.mubr.bf16.gmra.mrb[0].mxu0 %v343
        %v629 = vpop.f32.mrb[0].mxu0
        %v630 = vadd.f32 %v388, %v629
        %v631 = vpop.f32.mrb[0].mxu0
        %v632 = vadd.f32 %v392, %v631
        %v633 = vpop.f32.mrb[0].mxu0
        %v634 = vadd.f32 %v388, %v633
        %v635 = vpop.f32.mrb[0].mxu0
        %v636 = vadd.f32 %v392, %v635
        %637 = vmatprep.mubr.bf16.mxu0 %v346
        %638 = vmatmul.mubr.bf16.gmra.mrb[0].mxu0 %v345
        %v639 = vpop.f32.mrb[0].mxu0
        %v640 = vadd.f32 %v388, %v639
        %v641 = vpop.f32.mrb[0].mxu0
        %v642 = vadd.f32 %v392, %v641
        %v643 = vpop.f32.mrb[0].mxu0
        %v644 = vadd.f32 %v388, %v643
        %v645 = vpop.f32.mrb[0].mxu0
        %v646 = vadd.f32 %v392, %v645
        %647 = vmatprep.mubr.bf16.mxu0 %v348
        %648 = vmatmul.mubr.bf16.gmra.mrb[0].mxu0 %v347
        %v649 = vpop.f32.mrb[0].mxu0
        %v650 = vadd.f32 %v388, %v649
        %v651 = vpop.f32.mrb[0].mxu0
        %v652 = vadd.f32 %v392, %v651
        %v653 = vpop.f32.mrb[0].mxu0
        %v654 = vadd.f32 %v388, %v653
        %v655 = vpop.f32.mrb[0].mxu0
        %v656 = vadd.f32 %v392, %v655
        %657 = vmatprep.mubr.bf16.mxu0 %v350
        %658 = vmatmul.mubr.bf16.gmra.mrb[0].mxu0 %v349
        %v659 = vpop.f32.mrb[0].mxu0
        %v660 = vadd.f32 %v388, %v659
        %v661 = vpop.f32.mrb[0].mxu0
        %v662 = vadd.f32 %v392, %v661
        %v663 = vpop.f32.mrb[0].mxu0
        %v664 = vadd.f32 %v388, %v663
        %v665 = vpop.f32.mrb[0].mxu0
        %v666 = vadd.f32 %v392, %v665
        %667 = vdwg.mxu0
        %v668 = vmax.f32 %v590, 0.0
        %v669 = vmax.f32 %v592, 0.0
        %v670 = vmax.f32 %v594, 0.0
        %v671 = vmax.f32 %v596, 0.0
        %v672 = vmax.f32 %v600, 0.0
        %v673 = vmax.f32 %v602, 0.0
        %v674 = vmax.f32 %v604, 0.0
        %v675 = vmax.f32 %v606, 0.0
        %v676 = vmax.f32 %v610, 0.0
        %v677 = vmax.f32 %v612, 0.0
        %v678 = vmax.f32 %v614, 0.0
        %v679 = vmax.f32 %v616, 0.0
        %v680 = vmax.f32 %v620, 0.0
        %v681 = vmax.f32 %v622, 0.0
        %v682 = vmax.f32 %v624, 0.0
        %v683 = vmax.f32 %v626, 0.0
        %v684 = vmax.f32 %v630, 0.0
        %v685 = vmax.f32 %v632, 0.0
        %v686 = vmax.f32 %v634, 0.0
        %v687 = vmax.f32 %v636, 0.0
        %v688 = vmax.f32 %v640, 0.0
        %v689 = vmax.f32 %v642, 0.0
        %v690 = vmax.f32 %v644, 0.0
        %v691 = vmax.f32 %v646, 0.0
        %v692 = vmax.f32 %v650, 0.0
        %v693 = vmax.f32 %v652, 0.0
        %v694 = vmax.f32 %v654, 0.0
        %v695 = vmax.f32 %v656, 0.0
        %v696 = vmax.f32 %v660, 0.0
        %v697 = vmax.f32 %v662, 0.0
        %v698 = vmax.f32 %v664, 0.0
        %v699 = vmax.f32 %v666, 0.0
        %700 = vst [vmem:[%s247] sm:$0xff] %v668
        %701 = vst [vmem:[%s247 + $0x8] sm:$0xff] %v669
        %702 = vst [vmem:[%s247 + $0x10] sm:$0xff] %v670
        %703 = vst [vmem:[%s247 + $0x18] sm:$0xff] %v671
        %704 = vst [vmem:[%s247 + $0x20] sm:$0xff] %v672
        %705 = vst [vmem:[%s247 + $0x28] sm:$0xff] %v673
        %706 = vst [vmem:[%s247 + $0x30] sm:$0xff] %v674
        %707 = vst [vmem:[%s247 + $0x38] sm:$0xff] %v675
        %708 = vst [vmem:[%s247 + $0x40] sm:$0xff] %v676
        %709 = vst [vmem:[%s247 + $0x48] sm:$0xff] %v677
        %710 = vst [vmem:[%s247 + $0x50] sm:$0xff] %v678
        %711 = vst [vmem:[%s247 + $0x58] sm:$0xff] %v679
        %712 = vst [vmem:[%s247 + $0x60] sm:$0xff] %v680
        %713 = vst [vmem:[%s247 + $0x68] sm:$0xff] %v681
        %714 = vst [vmem:[%s247 + $0x70] sm:$0xff] %v682
        %715 = vst [vmem:[%s247 + $0x78] sm:$0xff] %v683
        %716 = vst [vmem:[%s247 + $0x80] sm:$0xff] %v684
        %717 = vst [vmem:[%s247 + $0x88] sm:$0xff] %v685
        %718 = vst [vmem:[%s247 + $0x90] sm:$0xff] %v686
        %719 = vst [vmem:[%s247 + $0x98] sm:$0xff] %v687
        %720 = vst [vmem:[%s247 + $0xa0] sm:$0xff] %v688
        %721 = vst [vmem:[%s247 + $0xa8] sm:$0xff] %v689
        %722 = vst [vmem:[%s247 + $0xb0] sm:$0xff] %v690
        %723 = vst [vmem:[%s247 + $0xb8] sm:$0xff] %v691
        %724 = vst [vmem:[%s247 + $0xc0] sm:$0xff] %v692
        %725 = vst [vmem:[%s247 + $0xc8] sm:$0xff] %v693
        %726 = vst [vmem:[%s247 + $0xd0] sm:$0xff] %v694
        %727 = vst [vmem:[%s247 + $0xd8] sm:$0xff] %v695
        %728 = vst [vmem:[%s247 + $0xe0] sm:$0xff] %v696
        %729 = vst [vmem:[%s247 + $0xe8] sm:$0xff] %v697
        %730 = vst [vmem:[%s247 + $0xf0] sm:$0xff] %v698
        %731 = vst [vmem:[%s247 + $0xf8] sm:$0xff] %v699
        %s732 = sand.u32 %s121, 1
        %s733 = scalar_lea.sflag [#allocation5], %s732
        %s734 = sand.u32 %s121, 1
        %s735 = smul.addr %s734, 256
        %s736 = scalar_lea.vmem [#allocation8], %s735
        // Predicated region
        $region45: #{tpu_custom_call.1} parent=31 // pred_check
          %p737 = pneg %p131
        $region46: #{tpu_custom_call.1} parent=31 // pred_check_branch
          %739 = sbr.rel (%p737) target = $region48
        $region47: #{tpu_custom_call.1} parent=31 // pred_region
          %s740 = smul.u32 16, %s25
          %s741 = smul.u32 2, %s26
          %s742 = ssub.s32 18, %s740
          %p743 = scmp.lt.s32.totalorder %s742, 16
          %s744 = scalar_select %p743, %s742, 16
          %s745 = smul.u32 128, %s744
          %s746 = smul.u32 %s745, 2
          %s748 = ssub.s32 4096, %s746
          %749 = vsyncadd %s733, %s748
          %p750 = scmp.ne.s32.totalorder 0, %s746
          %s751 = smul.addr %s740, 2
          %s752 = sadd.s32 %s741, %s751
          %s753 = smul.addr %s752, 128
          %s754 = scalar_lea.hbm %s3, %s753
          %s755 = smul.u32 16, %s744
          %s756 = sshll.u32 %s736, 4
          %s757 = int_to_ptr.vmem [resolvable:$true] %s756
          %s758 = sshll.u32 %s755, 4
          %762 = dma.vmem_to_hbm [thread:$0]  (%p750), %s757, %s758, %s754, %s733, 256, 256, 16
        $region48: #{tpu_custom_call.1} parent=31 // pred_fallthru
          _
      $region32: #{tpu_custom_call.1} parent=5 // pred_fallthru
        _
      %p763 = scmp.le.s32.totalorder 2, %s16
      // Predicated region
      $region49: #{tpu_custom_call.1} parent=5 // pred_check
        %p764 = pneg %p763
      $region50: #{tpu_custom_call.1} parent=5 // pred_check_branch
        %766 = sbr.rel (%p764) target = $region52
      $region51: #{tpu_custom_call.1} parent=5 // pred_region
        %s767 = ssub.s32 %s16, 2
        // Predicated region
        $region53: #{tpu_custom_call.1} parent=51 // pred_check
          %p768 = pneg %p137
        $region54: #{tpu_custom_call.1} parent=51 // pred_check_branch
          %770 = sbr.rel (%p768) target = $region56
        $region55: #{tpu_custom_call.1} parent=51 // pred_region
          %s771 = sand.u32 %s122, 1
          %s772 = scalar_lea.sflag [#allocation5], %s771
          %s773 = sand.u32 %s122, 1
          %s774 = smul.addr %s773, 256
          %s775 = scalar_lea.vmem [#allocation8], %s774
          %776 = dma.done %s772, 4096
        $region56: #{tpu_custom_call.1} parent=51 // pred_fallthru
          _
      $region52: #{tpu_custom_call.1} parent=5 // pred_fallthru
        _
    $region6: #{tpu_custom_call.1} parent=1 // loop_footer
      %s20 = sadd.s32 1, %s16
    $region7: #{tpu_custom_call.1} parent=1 // loop_footer_branch
      %15 = sbr.rel target = $region3
    $region8: #{tpu_custom_call.1} parent=1 // loop_exit
      _
    %777 = vsyncpa [#allocation4], 1
    %s778 = scalar_lea.sflag [#allocation4], 1
    %779 = vsyncpa %s778, 1
    %780 = vsyncpa [#allocation7], 1
    %781 = vsyncpa [#allocation5], 1
    %s782 = scalar_lea.sflag [#allocation5], 1
    %783 = vsyncpa %s782, 1

</llo_original>
